<compile_context>
chip_gen: v5e
topology: v5e:2x2
jax: 0.10.0
libtpu: 0.0.40
codegen_flags: <defaults>
</compile_context>

<pallas_src>
import functools

import jax
import jax.numpy as jnp
from jax.experimental import pallas as pl
from jax.experimental.pallas import tpu as pltpu


def _round_up(x, m):
    return ((x + m - 1) // m) * m


def _ce_sum(logits, labels):
    """Row-summed cross entropy.  logits: f32 [R, N]; labels: int32 [R, 1]."""
    m = jnp.max(logits, axis=1, keepdims=True)
    lse = m + jnp.log(jnp.sum(jnp.exp(logits - m), axis=1, keepdims=True))
    col = jax.lax.broadcasted_iota(jnp.int32, logits.shape, 1)
    picked = jnp.sum(jnp.where(col == labels, logits, 0.0), axis=1,
                     keepdims=True)
    return jnp.sum(lse - picked, keepdims=True).reshape(1, 1)


def _soft_kl_sum(t_logits, kd_logits, inv_tau):
    """sum_ij p_t * (log p_t - log p_s) at temperature T (inv_tau = 1/T)."""
    zt = t_logits * inv_tau
    zs = kd_logits * inv_tau
    # student log-softmax
    ms = jnp.max(zs, axis=1, keepdims=True)
    log_ps = zs - ms - jnp.log(jnp.sum(jnp.exp(zs - ms), axis=1,
                                       keepdims=True))
    # teacher: one exp() reused for both the softmax and the log-softmax
    mt = jnp.max(zt, axis=1, keepdims=True)
    et = jnp.exp(zt - mt)
    st = jnp.sum(et, axis=1, keepdims=True)
    log_pt = zt - mt - jnp.log(st)
    pt = et / st
    return jnp.sum(pt * (log_pt - log_ps), keepdims=True).reshape(1, 1)


def _hard_ce_sum(t_logits, kd_logits, num_classes):
    """Cross entropy of kd against argmax(teacher), summed over rows."""
    col = jax.lax.broadcasted_iota(jnp.int32, t_logits.shape, 1)
    tmax = jnp.max(t_logits, axis=1, keepdims=True)
    cand = jnp.where(t_logits == tmax, col, num_classes)   # first-occurrence
    t_label = jnp.min(cand, axis=1, keepdims=True)
    return _ce_sum(kd_logits, t_label)


def _ce_only_kernel(cls_ref, labels_ref, loss_ref, *, batch):
    """distillation_type == 'none': only the base criterion (mean CE)."""
    logits = cls_ref[...].astype(jnp.float32)
    loss_ref[...] = _ce_sum(logits, labels_ref[...]) / batch


def _distill_kernel(x_ref, w_ref, b_ref, cls_ref, kd_ref, labels_ref,
                    loss_ref, acc_ref, base_ref, *, alpha, tau,
                    distillation_type, num_classes, batch, k_rem, row_chunk):
    k = pl.program_id(0)
    nk = pl.num_programs(0)

    @pl.when(k == 0)
    def _init():
        acc_ref[...] = jnp.zeros_like(acc_ref)
        # Base criterion (mean CE on class-token logits) computed here, while
        # the epilogue's big temporaries are not yet live; cls/labels have a
        # constant index_map so they are already resident.
        base_ref[...] = _ce_sum(cls_ref[...].astype(jnp.float32),
                                labels_ref[...]) / batch

    # ---- teacher matmul: stream one K slice per grid step -----------------
    if k_rem:
        # Ragged last K block: contents past D are unspecified, so mask BOTH
        # the x tail columns and the w tail rows to zero before the dot.
        @pl.when(k < nk - 1)
        def _full_tile():
            acc_ref[...] += jnp.dot(x_ref[...], w_ref[...],
                                    preferred_element_type=jnp.float32)

        @pl.when(k == nk - 1)
        def _ragged_tile():
            bk = x_ref.shape[1]
            colk = jax.lax.broadcasted_iota(jnp.int32, (1, bk), 1)
            rowk = jax.lax.broadcasted_iota(jnp.int32, (bk, 1), 0)
            xm = jnp.where(colk < k_rem, x_ref[...],
                           jnp.zeros((), x_ref.dtype))
            wm = jnp.where(rowk < k_rem, w_ref[...],
                           jnp.zeros((), w_ref.dtype))
            acc_ref[...] += jnp.dot(xm, wm, preferred_element_type=jnp.float32)
    else:
        acc_ref[...] += jnp.dot(x_ref[...], w_ref[...],
                                preferred_element_type=jnp.float32)

    @pl.when(k == nk - 1)
    def _epilogue():
        f32 = jnp.float32
        bias = b_ref[...].astype(f32)                     # [1, N]
        inv_tau = 1.0 / tau

        def chunk_sum(acc_c, kd_c):
            t = acc_c + bias                              # teacher logits
            if distillation_type == "soft":
                return _soft_kl_sum(t, kd_c, inv_tau)
            return _hard_ce_sum(t, kd_c, num_classes)

        n_chunks = batch // row_chunk
        if n_chunks <= 1:
            total = chunk_sum(acc_ref[...], kd_ref[...].astype(f32))
        else:
            # Bound the epilogue live set for large B: 256-row slices of the
            # resident accumulator, scalar (1,1) carry.
            def body(c, tot):
                r0 = pl.multiple_of(c * row_chunk, row_chunk)
                acc_c = acc_ref[pl.ds(r0, row_chunk), :]
                kd_c = kd_ref[pl.ds(r0, row_chunk), :].astype(f32)
                return tot + chunk_sum(acc_c, kd_c)
            total = jax.lax.fori_loop(0, n_chunks, body,
                                      jnp.zeros((1, 1), f32))

        if distillation_type == "soft":
            distill = total * (tau * tau) / (batch * num_classes)
        else:
            distill = total / batch

        loss_ref[...] = base_ref[...] * (1.0 - alpha) + distill * alpha


def distillation_loss(inputs, outputs, labels, teacher_w, teacher_b,
                      *, distillation_type="soft", alpha=0.5, tau=1.0,
                      block_k=None):
    """JAX/Pallas equivalent of DistillationLoss.forward.

    base_criterion = mean cross entropy; teacher_model = linear classifier
    (weight [D, N], bias [N]) over the row-major flattened inputs.
    `outputs` is (class_token_logits, dist_token_logits) or a single array.
    """
    assert distillation_type in ("none", "soft", "hard")
    if isinstance(outputs, (tuple, list)):
        outputs_cls, outputs_kd = outputs
    else:
        outputs_cls, outputs_kd = outputs, None

    B, N = outputs_cls.shape
    labels2d = labels.reshape(B, 1).astype(jnp.int32)
    vmem = pl.BlockSpec(memory_space=pltpu.MemorySpace.VMEM)

    if distillation_type == "none":
        # Teacher inputs/weights/dist-token logits are never read: dedicated
        # CE-only kernel, nothing else is DMA'd.
        kernel = functools.partial(_ce_only_kernel, batch=B)
        out = pl.pallas_call(
            kernel,
            out_shape=jax.ShapeDtypeStruct((1, 1), jnp.float32),
            in_specs=[vmem, vmem],
            out_specs=vmem,
        )(outputs_cls, labels2d)
        return out[0, 0]

    if outputs_kd is None:
        raise ValueError(
            "When knowledge distillation is enabled, the model is expected to "
            "return a Tuple[Tensor, Tensor] with the output of the class_token "
            "and the dist_token")

    x_flat = inputs.reshape(B, -1)            # native dtype: no f32 upcast
    D = x_flat.shape[1]
    w_item = jnp.dtype(teacher_w.dtype).itemsize
    x_item = jnp.dtype(x_flat.dtype).itemsize
    o_item = jnp.dtype(outputs_cls.dtype).itemsize

    # ---- generation-aware VMEM budgeting -----------------------------------
    try:
        vmem_cap = int(pltpu.get_tpu_info().vmem_capacity_bytes)
    except Exception:                         # conservative fallback (v7x size)
        vmem_cap = 64 * 1024 * 1024
    # ~3/4 of physical VMEM for declared buffers: ~96-100 MiB on 128 MiB parts
    # (v5e/v6e), ~48 MiB on v7x so epilogue scratch fits under 64 MiB.
    vmem_limit = int(min((vmem_cap * 3) // 4, 100 * 1024 * 1024))

    # Epilogue chunk size: full batch when small, else 256-row (sublane-aligned)
    # slices of the resident accumulator.
    row_chunk = B if (B <= 256 or B % 256 != 0) else 256

    if block_k is None:
        resident = (2 * 2 * B * N * o_item        # cls + kd (double-buffered)
                    + 2 * (N * w_item + B * 4)    # bias + labels
                    + B * N * 4 + 4               # f32 accumulator + base
                    + 8 * row_chunk * N * 4)      # epilogue temporaries
        stream_budget = max(vmem_limit - resident - (4 << 20), 2 << 20)
        per_k_row = 2 * (N * w_item + B * x_item)   # dbl-buffered w + x tiles
        bk = (stream_budget // per_k_row // 256) * 256   # MXU-aligned (v6e/v7x)
        block_k = int(min(max(bk, 256), _round_up(D, 256)))
    assert block_k % 128 == 0, "block_k must be a multiple of 128 lanes"

    nk = pl.cdiv(D, block_k)
    k_rem = D % block_k                       # valid rows of the ragged tail
    teacher_b2d = teacher_b.reshape(1, N)

    kernel = functools.partial(
        _distill_kernel, alpha=float(alpha), tau=float(tau),
        distillation_type=distillation_type, num_classes=N, batch=B,
        k_rem=int(k_rem), row_chunk=int(row_chunk))

    cost = pl.CostEstimate(
        flops=2 * B * D * N,
        transcendentals=4 * B * N,
        bytes_accessed=(D * N * w_item + B * D * x_item
                        + 2 * B * N * o_item + B * N * 4))

    out = pl.pallas_call(
        kernel,
        out_shape=jax.ShapeDtypeStruct((1, 1), jnp.float32),
        grid=(nk,),
        in_specs=[
            pl.BlockSpec((B, block_k), lambda k: (0, k)),   # x (K-streamed)
            pl.BlockSpec((block_k, N), lambda k: (k, 0)),   # teacher_w slice
            pl.BlockSpec((1, N), lambda k: (0, 0)),         # teacher bias
            pl.BlockSpec((B, N), lambda k: (0, 0)),         # class-token logits
            pl.BlockSpec((B, N), lambda k: (0, 0)),         # dist-token logits
            pl.BlockSpec((B, 1), lambda k: (0, 0)),         # labels
        ],
        out_specs=pl.BlockSpec((1, 1), lambda k: (0, 0)),
        scratch_shapes=[pltpu.VMEM((B, N), jnp.float32),    # teacher-logit acc
                        pltpu.VMEM((1, 1), jnp.float32)],   # stashed base loss
        compiler_params=pltpu.CompilerParams(
            dimension_semantics=("arbitrary",),
            vmem_limit_bytes=vmem_limit),
        cost_estimate=cost,
    )(x_flat, teacher_w, teacher_b2d, outputs_cls, outputs_kd, labels2d)
    return out[0, 0]


def _reference_loss(inputs, outputs, labels, w, b, distillation_type, alpha, tau):
    """Pure-JAX reference matching the PyTorch semantics."""
    cls_, kd = outputs
    logp = jax.nn.log_softmax(cls_.astype(jnp.float32), axis=1)
    base = -jnp.mean(jnp.take_along_axis(logp, labels[:, None], axis=1))
    if distillation_type == "none":
        return base
    x = inputs.reshape(inputs.shape[0], -1)
    t = x @ w + b
    if distillation_type == "soft":
        T = tau
        lps = jax.nn.log_softmax(kd / T, axis=1)
        lpt = jax.nn.log_softmax(t / T, axis=1)
        dl = jnp.sum(jnp.exp(lpt) * (lpt - lps)) * (T * T) / kd.size
    else:
        tl = jnp.argmax(t, axis=1)
        lpk = jax.nn.log_softmax(kd, axis=1)
        dl = -jnp.mean(jnp.take_along_axis(lpk, tl[:, None], axis=1))
    return base * (1 - alpha) + dl * alpha


if __name__ == "__main__":
    key = jax.random.PRNGKey(0)
    B, C, H, W = 2, 4, 16, 16
    N = 32                      # num classes
    D = C * H * W
    k1, k2, k3, k4, k5 = jax.random.split(key, 5)

    inputs = jax.random.normal(k1, (B, C, H, W), jnp.float32)
    outputs_cls = jax.random.normal(k2, (B, N), jnp.float32)
    outputs_kd = jax.random.normal(k3, (B, N), jnp.float32)
    labels = jax.random.randint(k4, (B,), 0, N, dtype=jnp.int32)

    # Deterministic synthetic teacher_model: linear classifier over flat input.
    # (In real use, cast teacher_w to bf16 once at the caller to halve the
    # dominant weight stream; the kernel accumulates in f32 regardless.)
    teacher_w = jax.random.normal(k5, (D, N), jnp.float32) / jnp.sqrt(D)
    teacher_b = jnp.zeros((N,), jnp.float32)

    alpha, tau = 0.5, 2.0
    for dtype_ in ("none", "soft", "hard"):
        loss = distillation_loss(inputs, (outputs_cls, outputs_kd), labels,
                                 teacher_w, teacher_b,
                                 distillation_type=dtype_, alpha=alpha,
                                 tau=tau, block_k=256)   # exercises the K grid
        jax.block_until_ready(loss)
        ref = _reference_loss(inputs, (outputs_cls, outputs_kd), labels,
                              teacher_w, teacher_b, dtype_, alpha, tau)
        assert jnp.abs(loss - ref) < 1e-2, (dtype_, float(loss), float(ref))

    # Ragged K tail: block_k does not divide D, so the last weight/input tile
    # is masked in-kernel (no wrapper-side padding of teacher_w or x).
    loss = distillation_loss(inputs, (outputs_cls, outputs_kd), labels,
                             teacher_w, teacher_b, distillation_type="soft",
                             alpha=alpha, tau=tau, block_k=768)
    jax.block_until_ready(loss)
    ref = _reference_loss(inputs, (outputs_cls, outputs_kd), labels,
                          teacher_w, teacher_b, "soft", alpha, tau)
    assert jnp.abs(loss - ref) < 1e-2, (float(loss), float(ref))

    # Auto block_k path: generation-aware VMEM budgeting picks the tile size.
    loss = distillation_loss(inputs, (outputs_cls, outputs_kd), labels,
                             teacher_w, teacher_b, distillation_type="hard",
                             alpha=alpha, tau=tau)
    jax.block_until_ready(loss)
    ref = _reference_loss(inputs, (outputs_cls, outputs_kd), labels,
                          teacher_w, teacher_b, "hard", alpha, tau)
    assert jnp.abs(loss - ref) < 1e-2, (float(loss), float(ref))

    print("KERNEL_OK")
</pallas_src>

<mosaic_0001>
module attributes {stable_mosaic.version = 11 : i64} {
  func.func @_ce_only_kernel(%arg0: memref<2x32xf32, #tpu.memory_space<vmem>>, %arg1: memref<2x1xi32, #tpu.memory_space<vmem>>, %arg2: memref<1x1xf32, #tpu.memory_space<vmem>>) attributes {dimension_semantics = [], scalar_prefetch = 0 : i64, scratch_operands = 0 : i64, tpu.core_type = #tpu.core_type<tc>} {
    %c0 = arith.constant 0 : index
    %c0_0 = arith.constant 0 : index
    %0 = vector.load %arg0[%c0, %c0_0] : memref<2x32xf32, #tpu.memory_space<vmem>>, vector<2x32xf32>
    %c0_1 = arith.constant 0 : index
    %c0_2 = arith.constant 0 : index
    %1 = vector.load %arg1[%c0_1, %c0_2] : memref<2x1xi32, #tpu.memory_space<vmem>>, vector<2x1xi32>
    %cst = arith.constant dense<0xFF800000> : vector<2xf32>
    %2 = vector.multi_reduction <maximumf>, %0, %cst [1] : vector<2x32xf32> to vector<2xf32>
    %3 = vector.shape_cast %2 : vector<2xf32> to vector<2x1xf32>
    %4 = vector.broadcast %3 : vector<2x1xf32> to vector<2x32xf32>
    %5 = arith.subf %0, %4 : vector<2x32xf32>
    %6 = math.exp %5 : vector<2x32xf32>
    %cst_3 = arith.constant dense<0.000000e+00> : vector<2xf32>
    %7 = vector.multi_reduction <add>, %6, %cst_3 [1] : vector<2x32xf32> to vector<2xf32>
    %8 = vector.shape_cast %7 : vector<2xf32> to vector<2x1xf32>
    %9 = math.log %8 : vector<2x1xf32>
    %10 = arith.addf %3, %9 : vector<2x1xf32>
    %11 = tpu.iota {dimensions = array<i32: 1>} : vector<2x32xi32>
    %12 = vector.broadcast %1 : vector<2x1xi32> to vector<2x32xi32>
    %13 = arith.cmpi eq, %11, %12 : vector<2x32xi32>
    %cst_4 = arith.constant 0.000000e+00 : f32
    %14 = vector.broadcast %cst_4 : f32 to vector<2x32xf32>
    %15 = arith.select %13, %0, %14 : vector<2x32xi1>, vector<2x32xf32>
    %cst_5 = arith.constant dense<0.000000e+00> : vector<2xf32>
    %16 = vector.multi_reduction <add>, %15, %cst_5 [1] : vector<2x32xf32> to vector<2xf32>
    %17 = vector.shape_cast %16 : vector<2xf32> to vector<2x1xf32>
    %18 = arith.subf %10, %17 : vector<2x1xf32>
    %19 = vector.shape_cast %18 : vector<2x1xf32> to vector<1x2x1xf32>
    %cst_6 = arith.constant dense<0.000000e+00> : vector<1xf32>
    %20 = vector.multi_reduction <add>, %19, %cst_6 [1, 2] : vector<1x2x1xf32> to vector<1xf32>
    %21 = vector.shape_cast %20 : vector<1xf32> to vector<1x1x1xf32>
    %22 = vector.extract %21[0, 0, 0] : f32 from vector<1x1x1xf32>
    %23 = vector.broadcast %22 : f32 to vector<1x1xf32>
    %cst_7 = arith.constant 2.000000e+00 : f32
    %24 = vector.broadcast %cst_7 : f32 to vector<1x1xf32>
    %25 = arith.divf %23, %24 : vector<1x1xf32>
    %c0_8 = arith.constant 0 : index
    %c0_9 = arith.constant 0 : index
    %26 = vector.load %arg2[%c0_8, %c0_9] : memref<1x1xf32, #tpu.memory_space<vmem>>, vector<1x1xf32>
    tpu.vector_store %arg2[%c0_8, %c0_9], %25 {strides = array<i32>} : memref<1x1xf32, #tpu.memory_space<vmem>>, vector<1x1xf32>,
    return
  }
}

</mosaic_0001>

<llo_original>
// kernel: tpu_custom_call.1
$region0: #{tpu_custom_call.1}
  #allocation0 [shape = 'u32[]', space=smem, size = 0x4, offset = 0x4, fixed_abs, tag = 'smem constant byte address 0x4 - core index']
  #allocation1 [shape = 'u32[72,128]{1,0:T(1,128)}', space=vmem, size = 0x9000, scoped, tag = 'internal scratch']
  %s0 = inlined_call_operand.vmem [shape: f32[2,32], index: 0, kind: input, shape index: {}]
  %s1 = inlined_call_operand.vmem [shape: s32[2,1], index: 1, kind: input, shape index: {}]
  %s2 = inlined_call_operand.hbm [shape: f32[1,1], index: 2, kind: output, shape index: {}]
  %s3 = sld [smem:[#allocation0]]
  $region18: #{tpu_custom_call.1} parent=0
    _
  %s5 = ssub.s32 1, %s3
  %s6 = scalar_select 0, %s5, %s3
  $region1: #{tpu_custom_call.1} parent=0
    #allocation2 [shape = 'u8[512]{0}', space=vmem, size = 0x400, scoped, tag = 'output window, operand 0, single buffered']
    #allocation3 [shape = 's32[1]{0}', space=sflag, size = 0x4, scoped, tag = 'scoped memory for tpu_custom_call.1']
    %7 = vsyncpa [#allocation3], 0
    // Predicated region
    $region2: #{tpu_custom_call.1} parent=1 // pred_check
      _
    $region3: #{tpu_custom_call.1} parent=1 // pred_check_branch
      %9 = sbr.rel (0) target = $region5
    $region4: #{tpu_custom_call.1} parent=1 // pred_region
      _
    $region5: #{tpu_custom_call.1} parent=1 // pred_fallthru
      _
    // Predicated region
    $region6: #{tpu_custom_call.1} parent=1 // pred_check
      _
    $region7: #{tpu_custom_call.1} parent=1 // pred_check_branch
      %11 = sbr.rel (0) target = $region9
    $region8: #{tpu_custom_call.1} parent=1 // pred_region
      _
    $region9: #{tpu_custom_call.1} parent=1 // pred_fallthru
      _
    %v12 = vld [vmem:[%s0] sm:$0x3]
    %v13 = vld [vmem:[%s1] sm:$0x3]
    %vm14 = vcmask 254976
    %v15 = vsel %vm14, %v12, -inf
    %16 = vmax.xlane.f32.xlu0 %v15
    %v17 = vpop.xlane.xlu0 %16
    %v18 = vsub.f32 %v12, %v17
    %v19 = vmul.f32 %v18, 1.442695
    %v20 = vpow.pop %v19
    %v21 = vsel %vm14, %v20, 0.0
    %22 = vadd.xlane.f32.xlu0 %v21
    %v23 = vpop.xlane.xlu0 %22
    %v24 = vlog2.pop %v23
    %v25 = vmul.f32 %v24, 0.6931472
    %v26 = vadd.f32 %v17, %v25
    %v27 = vlaneseq
    %v28 = vand.u32 %v27, 127
    %29 = vset.pattern.permute.xlu0 0
    %30 = vperm.xlu0 %29, %v13
    %v31 = vpop.permute.xlu0 %30
    %vm32 = vcmp.eq.s32.totalorder %v28, %v31
    %v33 = vsel %vm32, %v12, 0.0
    %v34 = vsel %vm14, %v33, 0.0
    %35 = vadd.xlane.f32.xlu0 %v34
    %v36 = vpop.xlane.xlu0 %35
    %v37 = vsub.f32 %v26, %v36
    %vm38 = vcmask 1024
    %v39 = vsel %vm38, %v37, 0.0
    %40 = vadd.xlane.f32.xlu0 %v39
    %v41 = vpop.xlane.xlu0 %40
    %v42 = vrot.slane %v41, 4
    %v43 = vadd.f32 %v41, %v42
    %v44 = vrot.slane %v43, 2
    %v45 = vadd.f32 %v43, %v44
    %v46 = vrot.slane %v45, 1
    %v47 = vadd.f32 %v45, %v46
    %s48 = vtos %v47
    %v49 = vstv %s48
    %v50 = vrcp.pop 2.0
    %v51 = vmul.f32 2.0, %v50
    %v52 = vsub.f32 1.0, %v51
    %v53 = vmul.f32 %v50, %v52
    %v54 = vadd.f32 %v50, %v53
    %vm55 = vweird.f32 %v50
    %v56 = vsel %vm55, %v50, %v54
    %v57 = vmul.f32 %v49, %v56
    %vm58 = vcmask 0
    %59 = vst.msk [vmem:[#allocation2] sm:$0x1] %vm58, %v57
    // Predicated region
    $region10: #{tpu_custom_call.1} parent=1 // pred_check
      _
    $region11: #{tpu_custom_call.1} parent=1 // pred_check_branch
      %61 = sbr.rel (0) target = $region13
    $region12: #{tpu_custom_call.1} parent=1 // pred_region
      %63 = vsyncadd [#allocation3], 0
      %s65 = sshll.u32 [#allocation2], 4
      %s66 = int_to_ptr.vmem [resolvable:$true] %s65
      %s67 = sshll.u32 %s2, 4
      %s68 = int_to_ptr.hbm [resolvable:$true] %s67
      %70 = dma.vmem_to_hbm [thread:$0]  %s66, 16, %s68, [#allocation3]
    $region13: #{tpu_custom_call.1} parent=1 // pred_fallthru
      _
    // Predicated region
    $region14: #{tpu_custom_call.1} parent=1 // pred_check
      _
    $region15: #{tpu_custom_call.1} parent=1 // pred_check_branch
      %72 = sbr.rel (0) target = $region17
    $region16: #{tpu_custom_call.1} parent=1 // pred_region
      %74 = dma.done [#allocation3], 16
    $region17: #{tpu_custom_call.1} parent=1 // pred_fallthru
      _
    %75 = vsyncpa [#allocation3], 1

</llo_original>
